<compile_context>
chip_gen: v5e
topology: v5e:2x2
jax: 0.10.0
libtpu: 0.0.40
codegen_flags: <defaults>
</compile_context>

<pallas_src>
import functools

import jax
import jax.numpy as jnp
from jax.experimental import pallas as pl
from jax.experimental.pallas import tpu as pltpu


# Tables at or below this many bytes use the VMEM-resident gather.
_RESIDENT_TABLE_BYTES_MAX = 8 * 1024 * 1024
# Below this many gathered elements, plain XLA gather beats any pallas_call.
_MIN_PALLAS_ELEMENTS = 4096


def _round_up(x: int, m: int) -> int:
    return ((x + m - 1) // m) * m


# ---------------------------------------------------------------------------
# Strategy "hbm": table stays in HBM, per-row DMAs straight into the output.
# ---------------------------------------------------------------------------
def _hbm_gather_kernel(ids_ref, table_hbm, out_ref, sems, *, chunk, num_sems):
    """One grid step gathers `chunk` rows of the HBM table into out_ref.

    ids_ref:   (n_pad,)    int32 SMEM (scalar prefetch).
    table_hbm: (V, D)      raw HBM ref (memory_space=pl.ANY).
    out_ref:   (chunk, D)  VMEM output tile for this grid step.
    sems:      (num_sems,) DMA semaphores, used round-robin.
    """
    base = pl.program_id(0) * chunk
    # Issue all row DMAs first (they stay in flight concurrently), then drain.
    for t in range(chunk):
        row = ids_ref[base + t]
        pltpu.make_async_copy(
            table_hbm.at[row], out_ref.at[t], sems.at[t % num_sems]
        ).start()
    for t in range(chunk):
        # The wait descriptor only needs matching shapes + semaphore; the
        # source row index is irrelevant for the wait.
        pltpu.make_async_copy(
            table_hbm.at[0], out_ref.at[t], sems.at[t % num_sems]
        ).wait()


def _gather_hbm(ids, table, chunk, num_sems):
    n = int(ids.shape[0])
    v, d = int(table.shape[0]), int(table.shape[1])
    num_chunks = n // chunk
    kernel = functools.partial(_hbm_gather_kernel, chunk=chunk,
                               num_sems=num_sems)
    return pl.pallas_call(
        kernel,
        out_shape=jax.ShapeDtypeStruct((n, d), table.dtype),
        grid_spec=pltpu.PrefetchScalarGridSpec(
            num_scalar_prefetch=1,
            grid=(num_chunks,),
            in_specs=[pl.BlockSpec(memory_space=pl.ANY)],   # raw HBM table
            out_specs=pl.BlockSpec((chunk, d), lambda i, ids: (i, 0)),
            scratch_shapes=[pltpu.SemaphoreType.DMA((num_sems,))],
        ),
        compiler_params=pltpu.CompilerParams(
            dimension_semantics=("parallel",)),
    )(ids, table)


# ---------------------------------------------------------------------------
# Strategy "resident": whole table lives in VMEM; in-kernel dynamic row loads.
# ---------------------------------------------------------------------------
def _resident_gather_kernel(ids_ref, table_ref, out_ref, *, chunk):
    base = pl.program_id(0) * chunk
    for t in range(chunk):
        out_ref[t, :] = table_ref[ids_ref[base + t]]


def _gather_resident(ids, table, chunk):
    n = int(ids.shape[0])
    v, d = int(table.shape[0]), int(table.shape[1])
    num_chunks = n // chunk
    kernel = functools.partial(_resident_gather_kernel, chunk=chunk)
    return pl.pallas_call(
        kernel,
        out_shape=jax.ShapeDtypeStruct((n, d), table.dtype),
        grid_spec=pltpu.PrefetchScalarGridSpec(
            num_scalar_prefetch=1,
            grid=(num_chunks,),
            # Constant index_map: the table block is fetched once and stays
            # resident in VMEM across the whole grid.
            in_specs=[pl.BlockSpec((v, d), lambda i, ids: (0, 0))],
            out_specs=pl.BlockSpec((chunk, d), lambda i, ids: (i, 0)),
        ),
        compiler_params=pltpu.CompilerParams(
            dimension_semantics=("parallel",),
            vmem_limit_bytes=48 * 1024 * 1024),
    )(ids, table)


# ---------------------------------------------------------------------------
# Public gather wrapper with size-based dispatch.
# ---------------------------------------------------------------------------
def embedding_gather(ids, table, *, strategy="auto", chunk_size=128,
                     num_sems=8):
    """out[i, :] = table[ids[i], :].

    strategy: "auto" | "jax" | "resident" | "hbm".
    """
    n = int(ids.shape[0])
    v, d = int(table.shape[0]), int(table.shape[1])

    # Clamp out-of-vocab ids: the data-dependent DMAs / dynamic loads below
    # have no useful bounds reporting (torch nn.Embedding would raise).
    # TODO(synk): surface OOB ids instead of silently clamping.
    ids = jnp.clip(ids.astype(jnp.int32), 0, v - 1)

    table_bytes = v * d * jnp.dtype(table.dtype).itemsize
    if strategy == "auto":
        if n * d < _MIN_PALLAS_ELEMENTS:
            strategy = "jax"             # pallas_call launch overhead dominates
        elif table_bytes <= _RESIDENT_TABLE_BYTES_MAX:
            strategy = "resident"
        else:
            strategy = "hbm"

    if strategy == "jax":
        return jnp.take(table, ids, axis=0)

    # Sublane-dense chunking: chunk is a multiple of 8; pad n up to a multiple
    # of chunk (padded ids point at row 0 and are sliced off afterwards).
    chunk = _round_up(min(chunk_size, _round_up(n, 8)), 8)
    n_pad = _round_up(n, chunk)
    if n_pad != n:
        ids = jnp.pad(ids, (0, n_pad - n))

    if strategy == "resident":
        out = _gather_resident(ids, table, chunk)
    elif strategy == "hbm":
        out = _gather_hbm(ids, table, chunk, num_sems)
    else:
        raise ValueError(f"unknown strategy: {strategy!r}")

    return out if n_pad == n else out[:n]


# ---------------------------------------------------------------------------
# Module wrapper.
# ---------------------------------------------------------------------------
class AttendAndSpellPallas:
    """JAX/Pallas re-implementation of AttendAndSpell.forward semantics."""

    def __init__(self, vocab_size: int, num_inputs: int, dim_embed: int,
                 num_hidden: int, key=None):
        self.vocab_size = vocab_size
        self.num_inputs = num_inputs
        self.dim_embed = dim_embed
        self.num_hidden = num_hidden
        if key is None:
            key = jax.random.PRNGKey(0)
        k_embed, _k_lstm = jax.random.split(key)
        # nn.Embedding default init: N(0, 1).
        self.embed_weight = jax.random.normal(
            k_embed, (vocab_size, dim_embed), dtype=jnp.float32)
        # TODO(synk): self.L1 (nn.LSTM) is constructed in the reference module
        # but never used in forward(); its weights are not materialized here.

    def __call__(self, encoder_features, gt_outputs, *, strategy="auto"):
        """
        encoder_features: (seq_len, batch_size, num_features) — shape-only use.
        gt_outputs:       (batch_size, seq_len) int indices.
        returns char_embeddings: (batch_size, seq_len, dim_embed) f32 — the
        only value the reference forward() actually computes.
        """
        seq_len, batch_size, num_features = encoder_features.shape  # mirrors ref
        b, s = gt_outputs.shape
        ids = gt_outputs.reshape(b * s)
        out = embedding_gather(ids, self.embed_weight, strategy=strategy)
        return out.reshape(b, s, self.dim_embed)


if __name__ == "__main__":
    # Small shapes consistent with the forward signature.
    vocab_size = 16
    num_inputs = 16      # num_features of encoder output
    dim_embed = 32
    num_hidden = 32
    seq_len = 8
    batch_size = 2

    key = jax.random.PRNGKey(0)
    k_feat, k_ids, k_params, k_ids2 = jax.random.split(key, 4)

    encoder_features = jax.random.normal(
        k_feat, (seq_len, batch_size, num_inputs), dtype=jnp.float32)
    gt_outputs = jax.random.randint(
        k_ids, (batch_size, seq_len), 0, vocab_size, dtype=jnp.int32)

    model = AttendAndSpellPallas(vocab_size, num_inputs, dim_embed, num_hidden,
                                 key=k_params)
    ref = model.embed_weight[gt_outputs]            # (batch, seq, dim_embed)

    # 1) Default ("auto") dispatch — tiny problem, plain-XLA gather path.
    out_auto = jax.block_until_ready(model(encoder_features, gt_outputs))
    assert out_auto.shape == (batch_size, seq_len, dim_embed)
    assert jnp.allclose(out_auto, ref, atol=1e-6), "auto path mismatch"

    # 2) Force both Pallas paths at the module's shapes.
    out_res = jax.block_until_ready(
        model(encoder_features, gt_outputs, strategy="resident"))
    assert jnp.allclose(out_res, ref, atol=1e-6), "resident path mismatch"

    out_hbm = jax.block_until_ready(
        model(encoder_features, gt_outputs, strategy="hbm"))
    assert jnp.allclose(out_hbm, ref, atol=1e-6), "hbm path mismatch"

    # 3) A slightly larger id vector exercising multiple grid chunks and a
    #    ragged tail (n=400 ids, chunk=128 -> 4 steps, 112 padded rows sliced).
    ids_big = jax.random.randint(k_ids2, (400,), 0, vocab_size,
                                 dtype=jnp.int32)
    ref_big = model.embed_weight[ids_big]
    for strat in ("resident", "hbm"):
        out_big = jax.block_until_ready(
            embedding_gather(ids_big, model.embed_weight, strategy=strat))
        assert out_big.shape == ref_big.shape
        assert jnp.allclose(out_big, ref_big, atol=1e-6), f"{strat} mismatch"

    print("KERNEL_OK")
</pallas_src>

<mosaic_0001>
module attributes {stable_mosaic.version = 11 : i64} {
  func.func @_resident_gather_kernel(%arg0: i32, %arg1: memref<16xi32, #tpu.memory_space<smem>>, %arg2: memref<16x32xf32, #tpu.memory_space<vmem>>, %arg3: memref<16x32xf32, #tpu.memory_space<vmem>>) attributes {dimension_semantics = [#tpu.dimension_semantics<parallel>], iteration_bounds = array<i64: 1>, scalar_prefetch = 1 : i64, scratch_operands = 0 : i64, tpu.core_type = #tpu.core_type<tc>, window_params = [{pipeline_mode = #tpu.pipeline_mode<synchronous>, transform_indices = @transform_0, window_bounds = array<i64: 16, 32>}, {transform_indices = @transform_1, window_bounds = array<i64: 16, 32>}]} {
    %c16_i32 = arith.constant 16 : i32
    %0 = arith.muli %arg0, %c16_i32 : i32
    %c0_i32 = arith.constant 0 : i32
    %1 = arith.addi %0, %c0_i32 : i32
    %2 = arith.index_cast %1 : i32 to index
    %3 = memref.load %arg1[%2] : memref<16xi32, #tpu.memory_space<smem>>
    %4 = arith.index_cast %3 : i32 to index
    %c0 = arith.constant 0 : index
    %5 = vector.load %arg2[%4, %c0] : memref<16x32xf32, #tpu.memory_space<vmem>>, vector<1x32xf32>
    %6 = vector.shape_cast %5 : vector<1x32xf32> to vector<32xf32>
    %c0_0 = arith.constant 0 : index
    %c0_1 = arith.constant 0 : index
    %7 = vector.load %arg3[%c0_0, %c0_1] : memref<16x32xf32, #tpu.memory_space<vmem>>, vector<1x32xf32>
    %8 = vector.shape_cast %7 : vector<1x32xf32> to vector<32xf32>
    %9 = vector.shape_cast %6 : vector<32xf32> to vector<1x32xf32>
    tpu.vector_store %arg3[%c0_0, %c0_1], %9 {strides = array<i32>} : memref<16x32xf32, #tpu.memory_space<vmem>>, vector<1x32xf32>,
    %c1_i32 = arith.constant 1 : i32
    %10 = arith.addi %0, %c1_i32 : i32
    %11 = arith.index_cast %10 : i32 to index
    %12 = memref.load %arg1[%11] : memref<16xi32, #tpu.memory_space<smem>>
    %13 = arith.index_cast %12 : i32 to index
    %c0_2 = arith.constant 0 : index
    %14 = vector.load %arg2[%13, %c0_2] : memref<16x32xf32, #tpu.memory_space<vmem>>, vector<1x32xf32>
    %15 = vector.shape_cast %14 : vector<1x32xf32> to vector<32xf32>
    %c1 = arith.constant 1 : index
    %c0_3 = arith.constant 0 : index
    %16 = vector.load %arg3[%c1, %c0_3] : memref<16x32xf32, #tpu.memory_space<vmem>>, vector<1x32xf32>
    %17 = vector.shape_cast %16 : vector<1x32xf32> to vector<32xf32>
    %18 = vector.shape_cast %15 : vector<32xf32> to vector<1x32xf32>
    tpu.vector_store %arg3[%c1, %c0_3], %18 {strides = array<i32>} : memref<16x32xf32, #tpu.memory_space<vmem>>, vector<1x32xf32>,
    %c2_i32 = arith.constant 2 : i32
    %19 = arith.addi %0, %c2_i32 : i32
    %20 = arith.index_cast %19 : i32 to index
    %21 = memref.load %arg1[%20] : memref<16xi32, #tpu.memory_space<smem>>
    %22 = arith.index_cast %21 : i32 to index
    %c0_4 = arith.constant 0 : index
    %23 = vector.load %arg2[%22, %c0_4] : memref<16x32xf32, #tpu.memory_space<vmem>>, vector<1x32xf32>
    %24 = vector.shape_cast %23 : vector<1x32xf32> to vector<32xf32>
    %c2 = arith.constant 2 : index
    %c0_5 = arith.constant 0 : index
    %25 = vector.load %arg3[%c2, %c0_5] : memref<16x32xf32, #tpu.memory_space<vmem>>, vector<1x32xf32>
    %26 = vector.shape_cast %25 : vector<1x32xf32> to vector<32xf32>
    %27 = vector.shape_cast %24 : vector<32xf32> to vector<1x32xf32>
    tpu.vector_store %arg3[%c2, %c0_5], %27 {strides = array<i32>} : memref<16x32xf32, #tpu.memory_space<vmem>>, vector<1x32xf32>,
    %c3_i32 = arith.constant 3 : i32
    %28 = arith.addi %0, %c3_i32 : i32
    %29 = arith.index_cast %28 : i32 to index
    %30 = memref.load %arg1[%29] : memref<16xi32, #tpu.memory_space<smem>>
    %31 = arith.index_cast %30 : i32 to index
    %c0_6 = arith.constant 0 : index
    %32 = vector.load %arg2[%31, %c0_6] : memref<16x32xf32, #tpu.memory_space<vmem>>, vector<1x32xf32>
    %33 = vector.shape_cast %32 : vector<1x32xf32> to vector<32xf32>
    %c3 = arith.constant 3 : index
    %c0_7 = arith.constant 0 : index
    %34 = vector.load %arg3[%c3, %c0_7] : memref<16x32xf32, #tpu.memory_space<vmem>>, vector<1x32xf32>
    %35 = vector.shape_cast %34 : vector<1x32xf32> to vector<32xf32>
    %36 = vector.shape_cast %33 : vector<32xf32> to vector<1x32xf32>
    tpu.vector_store %arg3[%c3, %c0_7], %36 {strides = array<i32>} : memref<16x32xf32, #tpu.memory_space<vmem>>, vector<1x32xf32>,
    %c4_i32 = arith.constant 4 : i32
    %37 = arith.addi %0, %c4_i32 : i32
    %38 = arith.index_cast %37 : i32 to index
    %39 = memref.load %arg1[%38] : memref<16xi32, #tpu.memory_space<smem>>
    %40 = arith.index_cast %39 : i32 to index
    %c0_8 = arith.constant 0 : index
    %41 = vector.load %arg2[%40, %c0_8] : memref<16x32xf32, #tpu.memory_space<vmem>>, vector<1x32xf32>
    %42 = vector.shape_cast %41 : vector<1x32xf32> to vector<32xf32>
    %c4 = arith.constant 4 : index
    %c0_9 = arith.constant 0 : index
    %43 = vector.load %arg3[%c4, %c0_9] : memref<16x32xf32, #tpu.memory_space<vmem>>, vector<1x32xf32>
    %44 = vector.shape_cast %43 : vector<1x32xf32> to vector<32xf32>
    %45 = vector.shape_cast %42 : vector<32xf32> to vector<1x32xf32>
    tpu.vector_store %arg3[%c4, %c0_9], %45 {strides = array<i32>} : memref<16x32xf32, #tpu.memory_space<vmem>>, vector<1x32xf32>,
    %c5_i32 = arith.constant 5 : i32
    %46 = arith.addi %0, %c5_i32 : i32
    %47 = arith.index_cast %46 : i32 to index
    %48 = memref.load %arg1[%47] : memref<16xi32, #tpu.memory_space<smem>>
    %49 = arith.index_cast %48 : i32 to index
    %c0_10 = arith.constant 0 : index
    %50 = vector.load %arg2[%49, %c0_10] : memref<16x32xf32, #tpu.memory_space<vmem>>, vector<1x32xf32>
    %51 = vector.shape_cast %50 : vector<1x32xf32> to vector<32xf32>
    %c5 = arith.constant 5 : index
    %c0_11 = arith.constant 0 : index
    %52 = vector.load %arg3[%c5, %c0_11] : memref<16x32xf32, #tpu.memory_space<vmem>>, vector<1x32xf32>
    %53 = vector.shape_cast %52 : vector<1x32xf32> to vector<32xf32>
    %54 = vector.shape_cast %51 : vector<32xf32> to vector<1x32xf32>
    tpu.vector_store %arg3[%c5, %c0_11], %54 {strides = array<i32>} : memref<16x32xf32, #tpu.memory_space<vmem>>, vector<1x32xf32>,
    %c6_i32 = arith.constant 6 : i32
    %55 = arith.addi %0, %c6_i32 : i32
    %56 = arith.index_cast %55 : i32 to index
    %57 = memref.load %arg1[%56] : memref<16xi32, #tpu.memory_space<smem>>
    %58 = arith.index_cast %57 : i32 to index
    %c0_12 = arith.constant 0 : index
    %59 = vector.load %arg2[%58, %c0_12] : memref<16x32xf32, #tpu.memory_space<vmem>>, vector<1x32xf32>
    %60 = vector.shape_cast %59 : vector<1x32xf32> to vector<32xf32>
    %c6 = arith.constant 6 : index
    %c0_13 = arith.constant 0 : index
    %61 = vector.load %arg3[%c6, %c0_13] : memref<16x32xf32, #tpu.memory_space<vmem>>, vector<1x32xf32>
    %62 = vector.shape_cast %61 : vector<1x32xf32> to vector<32xf32>
    %63 = vector.shape_cast %60 : vector<32xf32> to vector<1x32xf32>
    tpu.vector_store %arg3[%c6, %c0_13], %63 {strides = array<i32>} : memref<16x32xf32, #tpu.memory_space<vmem>>, vector<1x32xf32>,
    %c7_i32 = arith.constant 7 : i32
    %64 = arith.addi %0, %c7_i32 : i32
    %65 = arith.index_cast %64 : i32 to index
    %66 = memref.load %arg1[%65] : memref<16xi32, #tpu.memory_space<smem>>
    %67 = arith.index_cast %66 : i32 to index
    %c0_14 = arith.constant 0 : index
    %68 = vector.load %arg2[%67, %c0_14] : memref<16x32xf32, #tpu.memory_space<vmem>>, vector<1x32xf32>
    %69 = vector.shape_cast %68 : vector<1x32xf32> to vector<32xf32>
    %c7 = arith.constant 7 : index
    %c0_15 = arith.constant 0 : index
    %70 = vector.load %arg3[%c7, %c0_15] : memref<16x32xf32, #tpu.memory_space<vmem>>, vector<1x32xf32>
    %71 = vector.shape_cast %70 : vector<1x32xf32> to vector<32xf32>
    %72 = vector.shape_cast %69 : vector<32xf32> to vector<1x32xf32>
    tpu.vector_store %arg3[%c7, %c0_15], %72 {strides = array<i32>} : memref<16x32xf32, #tpu.memory_space<vmem>>, vector<1x32xf32>,
    %c8_i32 = arith.constant 8 : i32
    %73 = arith.addi %0, %c8_i32 : i32
    %74 = arith.index_cast %73 : i32 to index
    %75 = memref.load %arg1[%74] : memref<16xi32, #tpu.memory_space<smem>>
    %76 = arith.index_cast %75 : i32 to index
    %c0_16 = arith.constant 0 : index
    %77 = vector.load %arg2[%76, %c0_16] : memref<16x32xf32, #tpu.memory_space<vmem>>, vector<1x32xf32>
    %78 = vector.shape_cast %77 : vector<1x32xf32> to vector<32xf32>
    %c8 = arith.constant 8 : index
    %c0_17 = arith.constant 0 : index
    %79 = vector.load %arg3[%c8, %c0_17] : memref<16x32xf32, #tpu.memory_space<vmem>>, vector<1x32xf32>
    %80 = vector.shape_cast %79 : vector<1x32xf32> to vector<32xf32>
    %81 = vector.shape_cast %78 : vector<32xf32> to vector<1x32xf32>
    tpu.vector_store %arg3[%c8, %c0_17], %81 {strides = array<i32>} : memref<16x32xf32, #tpu.memory_space<vmem>>, vector<1x32xf32>,
    %c9_i32 = arith.constant 9 : i32
    %82 = arith.addi %0, %c9_i32 : i32
    %83 = arith.index_cast %82 : i32 to index
    %84 = memref.load %arg1[%83] : memref<16xi32, #tpu.memory_space<smem>>
    %85 = arith.index_cast %84 : i32 to index
    %c0_18 = arith.constant 0 : index
    %86 = vector.load %arg2[%85, %c0_18] : memref<16x32xf32, #tpu.memory_space<vmem>>, vector<1x32xf32>
    %87 = vector.shape_cast %86 : vector<1x32xf32> to vector<32xf32>
    %c9 = arith.constant 9 : index
    %c0_19 = arith.constant 0 : index
    %88 = vector.load %arg3[%c9, %c0_19] : memref<16x32xf32, #tpu.memory_space<vmem>>, vector<1x32xf32>
    %89 = vector.shape_cast %88 : vector<1x32xf32> to vector<32xf32>
    %90 = vector.shape_cast %87 : vector<32xf32> to vector<1x32xf32>
    tpu.vector_store %arg3[%c9, %c0_19], %90 {strides = array<i32>} : memref<16x32xf32, #tpu.memory_space<vmem>>, vector<1x32xf32>,
    %c10_i32 = arith.constant 10 : i32
    %91 = arith.addi %0, %c10_i32 : i32
    %92 = arith.index_cast %91 : i32 to index
    %93 = memref.load %arg1[%92] : memref<16xi32, #tpu.memory_space<smem>>
    %94 = arith.index_cast %93 : i32 to index
    %c0_20 = arith.constant 0 : index
    %95 = vector.load %arg2[%94, %c0_20] : memref<16x32xf32, #tpu.memory_space<vmem>>, vector<1x32xf32>
    %96 = vector.shape_cast %95 : vector<1x32xf32> to vector<32xf32>
    %c10 = arith.constant 10 : index
    %c0_21 = arith.constant 0 : index
    %97 = vector.load %arg3[%c10, %c0_21] : memref<16x32xf32, #tpu.memory_space<vmem>>, vector<1x32xf32>
    %98 = vector.shape_cast %97 : vector<1x32xf32> to vector<32xf32>
    %99 = vector.shape_cast %96 : vector<32xf32> to vector<1x32xf32>
    tpu.vector_store %arg3[%c10, %c0_21], %99 {strides = array<i32>} : memref<16x32xf32, #tpu.memory_space<vmem>>, vector<1x32xf32>,
    %c11_i32 = arith.constant 11 : i32
    %100 = arith.addi %0, %c11_i32 : i32
    %101 = arith.index_cast %100 : i32 to index
    %102 = memref.load %arg1[%101] : memref<16xi32, #tpu.memory_space<smem>>
    %103 = arith.index_cast %102 : i32 to index
    %c0_22 = arith.constant 0 : index
    %104 = vector.load %arg2[%103, %c0_22] : memref<16x32xf32, #tpu.memory_space<vmem>>, vector<1x32xf32>
    %105 = vector.shape_cast %104 : vector<1x32xf32> to vector<32xf32>
    %c11 = arith.constant 11 : index
    %c0_23 = arith.constant 0 : index
    %106 = vector.load %arg3[%c11, %c0_23] : memref<16x32xf32, #tpu.memory_space<vmem>>, vector<1x32xf32>
    %107 = vector.shape_cast %106 : vector<1x32xf32> to vector<32xf32>
    %108 = vector.shape_cast %105 : vector<32xf32> to vector<1x32xf32>
    tpu.vector_store %arg3[%c11, %c0_23], %108 {strides = array<i32>} : memref<16x32xf32, #tpu.memory_space<vmem>>, vector<1x32xf32>,
    %c12_i32 = arith.constant 12 : i32
    %109 = arith.addi %0, %c12_i32 : i32
    %110 = arith.index_cast %109 : i32 to index
    %111 = memref.load %arg1[%110] : memref<16xi32, #tpu.memory_space<smem>>
    %112 = arith.index_cast %111 : i32 to index
    %c0_24 = arith.constant 0 : index
    %113 = vector.load %arg2[%112, %c0_24] : memref<16x32xf32, #tpu.memory_space<vmem>>, vector<1x32xf32>
    %114 = vector.shape_cast %113 : vector<1x32xf32> to vector<32xf32>
    %c12 = arith.constant 12 : index
    %c0_25 = arith.constant 0 : index
    %115 = vector.load %arg3[%c12, %c0_25] : memref<16x32xf32, #tpu.memory_space<vmem>>, vector<1x32xf32>
    %116 = vector.shape_cast %115 : vector<1x32xf32> to vector<32xf32>
    %117 = vector.shape_cast %114 : vector<32xf32> to vector<1x32xf32>
    tpu.vector_store %arg3[%c12, %c0_25], %117 {strides = array<i32>} : memref<16x32xf32, #tpu.memory_space<vmem>>, vector<1x32xf32>,
    %c13_i32 = arith.constant 13 : i32
    %118 = arith.addi %0, %c13_i32 : i32
    %119 = arith.index_cast %118 : i32 to index
    %120 = memref.load %arg1[%119] : memref<16xi32, #tpu.memory_space<smem>>
    %121 = arith.index_cast %120 : i32 to index
    %c0_26 = arith.constant 0 : index
    %122 = vector.load %arg2[%121, %c0_26] : memref<16x32xf32, #tpu.memory_space<vmem>>, vector<1x32xf32>
    %123 = vector.shape_cast %122 : vector<1x32xf32> to vector<32xf32>
    %c13 = arith.constant 13 : index
    %c0_27 = arith.constant 0 : index
    %124 = vector.load %arg3[%c13, %c0_27] : memref<16x32xf32, #tpu.memory_space<vmem>>, vector<1x32xf32>
    %125 = vector.shape_cast %124 : vector<1x32xf32> to vector<32xf32>
    %126 = vector.shape_cast %123 : vector<32xf32> to vector<1x32xf32>
    tpu.vector_store %arg3[%c13, %c0_27], %126 {strides = array<i32>} : memref<16x32xf32, #tpu.memory_space<vmem>>, vector<1x32xf32>,
    %c14_i32 = arith.constant 14 : i32
    %127 = arith.addi %0, %c14_i32 : i32
    %128 = arith.index_cast %127 : i32 to index
    %129 = memref.load %arg1[%128] : memref<16xi32, #tpu.memory_space<smem>>
    %130 = arith.index_cast %129 : i32 to index
    %c0_28 = arith.constant 0 : index
    %131 = vector.load %arg2[%130, %c0_28] : memref<16x32xf32, #tpu.memory_space<vmem>>, vector<1x32xf32>
    %132 = vector.shape_cast %131 : vector<1x32xf32> to vector<32xf32>
    %c14 = arith.constant 14 : index
    %c0_29 = arith.constant 0 : index
    %133 = vector.load %arg3[%c14, %c0_29] : memref<16x32xf32, #tpu.memory_space<vmem>>, vector<1x32xf32>
    %134 = vector.shape_cast %133 : vector<1x32xf32> to vector<32xf32>
    %135 = vector.shape_cast %132 : vector<32xf32> to vector<1x32xf32>
    tpu.vector_store %arg3[%c14, %c0_29], %135 {strides = array<i32>} : memref<16x32xf32, #tpu.memory_space<vmem>>, vector<1x32xf32>,
    %c15_i32 = arith.constant 15 : i32
    %136 = arith.addi %0, %c15_i32 : i32
    %137 = arith.index_cast %136 : i32 to index
    %138 = memref.load %arg1[%137] : memref<16xi32, #tpu.memory_space<smem>>
    %139 = arith.index_cast %138 : i32 to index
    %c0_30 = arith.constant 0 : index
    %140 = vector.load %arg2[%139, %c0_30] : memref<16x32xf32, #tpu.memory_space<vmem>>, vector<1x32xf32>
    %141 = vector.shape_cast %140 : vector<1x32xf32> to vector<32xf32>
    %c15 = arith.constant 15 : index
    %c0_31 = arith.constant 0 : index
    %142 = vector.load %arg3[%c15, %c0_31] : memref<16x32xf32, #tpu.memory_space<vmem>>, vector<1x32xf32>
    %143 = vector.shape_cast %142 : vector<1x32xf32> to vector<32xf32>
    %144 = vector.shape_cast %141 : vector<32xf32> to vector<1x32xf32>
    tpu.vector_store %arg3[%c15, %c0_31], %144 {strides = array<i32>} : memref<16x32xf32, #tpu.memory_space<vmem>>, vector<1x32xf32>,
    return
  }
  func.func @transform_0(%arg0: i32, %arg1: memref<16xi32, #tpu.memory_space<smem>>) -> (i32, i32) {
    %c0_i32 = arith.constant 0 : i32
    %c0_i32_0 = arith.constant 0 : i32
    %c0_i32_1 = arith.constant 0 : i32
    return %c0_i32, %c0_i32_0 : i32, i32
  }
  func.func @transform_1(%arg0: i32, %arg1: memref<16xi32, #tpu.memory_space<smem>>) -> (i32, i32) {
    %c0_i32 = arith.constant 0 : i32
    %c0_i32_0 = arith.constant 0 : i32
    return %arg0, %c0_i32 : i32, i32
  }
}

</mosaic_0001>

<llo_original>
// kernel: tpu_custom_call.1
$region0: #{tpu_custom_call.1}
  #allocation0 [shape = 'u32[]', space=smem, size = 0x4, offset = 0x4, fixed_abs, tag = 'smem constant byte address 0x4 - core index']
  #allocation1 [shape = 'u32[72,128]{1,0:T(1,128)}', space=vmem, size = 0x9000, scoped, tag = 'internal scratch']
  #allocation2 [shape = 's32[1]{0}', space=sflag, size = 0x4, scoped, tag = 'scoped memory for tpu_custom_call.1']
  #allocation3 [shape = 'u8[512]{0}', space=smem, size = 0x200, scoped, tag = 'prefetched SMEM operand 0']
  %s0 = inlined_call_operand.hbm [shape: s32[16], index: 0, kind: input, shape index: {}]
  %s1 = inlined_call_operand.hbm [shape: f32[16,32], index: 1, kind: input, shape index: {}]
  %s2 = inlined_call_operand.hbm [shape: f32[16,32], index: 2, kind: output, shape index: {}]
  %s3 = sld [smem:[#allocation0]]
  $region18: #{tpu_custom_call.1} parent=0
    _
  %s5 = ssub.s32 1, %s3
  %s6 = scalar_select 0, %s5, %s3
  %s8 = sshll.u32 %s0, 4
  %s9 = int_to_ptr.hbm [resolvable:$true] %s8
  %11 = dma.hbm_to_smem %s9, 16, [#allocation3], [#allocation2]
  %13 = dma.done [#allocation2], 16
  %14 = sfence
  $region1: #{tpu_custom_call.1} parent=0
    #allocation4 [shape = 'u8[8192]{0}', space=vmem, size = 0x2000, scoped, tag = 'input window, operand 1, single buffered']
    #allocation5 [shape = 's32[1]{0}', space=sflag, size = 0x4, scoped, tag = 'scoped memory for tpu_custom_call.1']
    #allocation6 [shape = 's32[1]{0}', space=sflag, size = 0x4, scoped, tag = 'scoped memory for tpu_custom_call.1']
    #allocation7 [shape = 'u8[8192]{0}', space=vmem, size = 0x2000, scoped, tag = 'output window, operand 0, single buffered']
    %15 = vsyncpa [#allocation5], 0
    %16 = vsyncpa [#allocation6], 0
    // Predicated region
    $region2: #{tpu_custom_call.1} parent=1 // pred_check
      _
    $region3: #{tpu_custom_call.1} parent=1 // pred_check_branch
      %18 = sbr.rel (0) target = $region5
    $region4: #{tpu_custom_call.1} parent=1 // pred_region
      %20 = vsyncadd [#allocation5], 0
      %s21 = sshll.u32 %s1, 4
      %s22 = int_to_ptr.hbm [resolvable:$true] %s21
      %s23 = sshll.u32 [#allocation4], 4
      %s24 = int_to_ptr.vmem [resolvable:$true] %s23
      %29 = dma.hbm_to_vmem [thread:$0]  %s22, 256, %s24, [#allocation5], 128, 128, 8
    $region5: #{tpu_custom_call.1} parent=1 // pred_fallthru
      _
    // Predicated region
    $region6: #{tpu_custom_call.1} parent=1 // pred_check
      _
    $region7: #{tpu_custom_call.1} parent=1 // pred_check_branch
      %31 = sbr.rel (0) target = $region9
    $region8: #{tpu_custom_call.1} parent=1 // pred_region
      %33 = dma.done [#allocation5], 256
    $region9: #{tpu_custom_call.1} parent=1 // pred_fallthru
      _
    %s34 = smul.u32 0, 16
    %s35 = sld [smem:[#allocation3 + %s34]]
    %s36 = scalar_lea.vmem [#allocation4], %s35
    %v37 = vld [vmem:[%s36] sm:$0x1]
    %vm38 = vcmask 253952
    %39 = vst.msk [vmem:[#allocation7] sm:$0x1] %vm38, %v37
    %s40 = sadd.s32 %s34, 1
    %s41 = sld [smem:[#allocation3 + %s40]]
    %s42 = scalar_lea.vmem [#allocation4], %s41
    %v43 = vld [vmem:[%s42] sm:$0x1]
    %44 = vst.msk [vmem:[#allocation7 + $0x1] sm:$0x1] %vm38, %v43
    %s45 = sadd.s32 %s34, 2
    %s46 = sld [smem:[#allocation3 + %s45]]
    %s47 = scalar_lea.vmem [#allocation4], %s46
    %v48 = vld [vmem:[%s47] sm:$0x1]
    %49 = vst.msk [vmem:[#allocation7 + $0x2] sm:$0x1] %vm38, %v48
    %s50 = sadd.s32 %s34, 3
    %s51 = sld [smem:[#allocation3 + %s50]]
    %s52 = scalar_lea.vmem [#allocation4], %s51
    %v53 = vld [vmem:[%s52] sm:$0x1]
    %54 = vst.msk [vmem:[#allocation7 + $0x3] sm:$0x1] %vm38, %v53
    %s55 = sadd.s32 %s34, 4
    %s56 = sld [smem:[#allocation3 + %s55]]
    %s57 = scalar_lea.vmem [#allocation4], %s56
    %v58 = vld [vmem:[%s57] sm:$0x1]
    %59 = vst.msk [vmem:[#allocation7 + $0x4] sm:$0x1] %vm38, %v58
    %s60 = sadd.s32 %s34, 5
    %s61 = sld [smem:[#allocation3 + %s60]]
    %s62 = scalar_lea.vmem [#allocation4], %s61
    %v63 = vld [vmem:[%s62] sm:$0x1]
    %64 = vst.msk [vmem:[#allocation7 + $0x5] sm:$0x1] %vm38, %v63
    %s65 = sadd.s32 %s34, 6
    %s66 = sld [smem:[#allocation3 + %s65]]
    %s67 = scalar_lea.vmem [#allocation4], %s66
    %v68 = vld [vmem:[%s67] sm:$0x1]
    %69 = vst.msk [vmem:[#allocation7 + $0x6] sm:$0x1] %vm38, %v68
    %s70 = sadd.s32 %s34, 7
    %s71 = sld [smem:[#allocation3 + %s70]]
    %s72 = scalar_lea.vmem [#allocation4], %s71
    %v73 = vld [vmem:[%s72] sm:$0x1]
    %74 = vst.msk [vmem:[#allocation7 + $0x7] sm:$0x1] %vm38, %v73
    %s75 = sadd.s32 %s34, 8
    %s76 = sld [smem:[#allocation3 + %s75]]
    %s77 = scalar_lea.vmem [#allocation4], %s76
    %v78 = vld [vmem:[%s77] sm:$0x1]
    %79 = vst.msk [vmem:[#allocation7 + $0x8] sm:$0x1] %vm38, %v78
    %s80 = sadd.s32 %s34, 9
    %s81 = sld [smem:[#allocation3 + %s80]]
    %s82 = scalar_lea.vmem [#allocation4], %s81
    %v83 = vld [vmem:[%s82] sm:$0x1]
    %84 = vst.msk [vmem:[#allocation7 + $0x9] sm:$0x1] %vm38, %v83
    %s85 = sadd.s32 %s34, 10
    %s86 = sld [smem:[#allocation3 + %s85]]
    %s87 = scalar_lea.vmem [#allocation4], %s86
    %v88 = vld [vmem:[%s87] sm:$0x1]
    %89 = vst.msk [vmem:[#allocation7 + $0xa] sm:$0x1] %vm38, %v88
    %s90 = sadd.s32 %s34, 11
    %s91 = sld [smem:[#allocation3 + %s90]]
    %s92 = scalar_lea.vmem [#allocation4], %s91
    %v93 = vld [vmem:[%s92] sm:$0x1]
    %94 = vst.msk [vmem:[#allocation7 + $0xb] sm:$0x1] %vm38, %v93
    %s95 = sadd.s32 %s34, 12
    %s96 = sld [smem:[#allocation3 + %s95]]
    %s97 = scalar_lea.vmem [#allocation4], %s96
    %v98 = vld [vmem:[%s97] sm:$0x1]
    %99 = vst.msk [vmem:[#allocation7 + $0xc] sm:$0x1] %vm38, %v98
    %s100 = sadd.s32 %s34, 13
    %s101 = sld [smem:[#allocation3 + %s100]]
    %s102 = scalar_lea.vmem [#allocation4], %s101
    %v103 = vld [vmem:[%s102] sm:$0x1]
    %104 = vst.msk [vmem:[#allocation7 + $0xd] sm:$0x1] %vm38, %v103
    %s105 = sadd.s32 %s34, 14
    %s106 = sld [smem:[#allocation3 + %s105]]
    %s107 = scalar_lea.vmem [#allocation4], %s106
    %v108 = vld [vmem:[%s107] sm:$0x1]
    %109 = vst.msk [vmem:[#allocation7 + $0xe] sm:$0x1] %vm38, %v108
    %s110 = sadd.s32 %s34, 15
    %s111 = sld [smem:[#allocation3 + %s110]]
    %s112 = scalar_lea.vmem [#allocation4], %s111
    %v113 = vld [vmem:[%s112] sm:$0x1]
    %114 = vst.msk [vmem:[#allocation7 + $0xf] sm:$0x1] %vm38, %v113
    // Predicated region
    $region10: #{tpu_custom_call.1} parent=1 // pred_check
      _
    $region11: #{tpu_custom_call.1} parent=1 // pred_check_branch
      %116 = sbr.rel (0) target = $region13
    $region12: #{tpu_custom_call.1} parent=1 // pred_region
      %118 = vsyncadd [#allocation6], 0
      %s119 = sshll.u32 [#allocation7], 4
      %s120 = int_to_ptr.vmem [resolvable:$true] %s119
      %s121 = sshll.u32 %s2, 4
      %s122 = int_to_ptr.hbm [resolvable:$true] %s121
      %127 = dma.vmem_to_hbm [thread:$0]  %s120, 256, %s122, [#allocation6], 128, 128, 8
    $region13: #{tpu_custom_call.1} parent=1 // pred_fallthru
      _
    // Predicated region
    $region14: #{tpu_custom_call.1} parent=1 // pred_check
      _
    $region15: #{tpu_custom_call.1} parent=1 // pred_check_branch
      %129 = sbr.rel (0) target = $region17
    $region16: #{tpu_custom_call.1} parent=1 // pred_region
      %131 = dma.done [#allocation6], 256
    $region17: #{tpu_custom_call.1} parent=1 // pred_fallthru
      _
    %132 = vsyncpa [#allocation5], 1
    %133 = vsyncpa [#allocation6], 1

</llo_original>
